<compile_context>
chip_gen: v5e
topology: v5e:2x2
jax: 0.10.0
libtpu: 0.0.40
codegen_flags: <defaults>
</compile_context>

<pallas_src>
import jax
import jax.numpy as jnp
from jax.experimental import pallas as pl
from jax.experimental.pallas import tpu as pltpu

LANE = 128          # TPU lane width; output columns are padded to this
TM_MAX = 256        # M-tile height when N is large (2x256 MXU on v6e/v7x)


def classification_mlp_kernel(x_ref, w_ref, b_ref, o_ref):
    # x_ref: (tm, F)   bf16 flattened tokens for this batch tile
    # w_ref: (F, Cp)   bf16 Linear weight, pre-transposed + column-padded
    # b_ref: (1, Cp)   f32 bias (column-padded)
    # o_ref: (tm, Cp)  f32 output tile (lane-dense: Cp is a multiple of 128)
    y = jnp.dot(x_ref[...], w_ref[...], preferred_element_type=jnp.float32)
    o_ref[...] = (y + b_ref[...]).astype(o_ref.dtype)


def classification_mlp_forward(x, params, num_classes):
    """x: (N, patch_count+1, embedding_dim) -> (N, num_classes)."""
    N = x.shape[0]
    F = x.shape[1] * x.shape[2]
    w = params["w"]                      # (F, Cp) bf16, zero-padded columns
    b = params["b"]                      # (1, Cp) f32,  zero-padded columns
    Cp = w.shape[1]

    # nn.Flatten(): contiguous merge of trailing dims (layout-free reshape),
    # then cast activations to bf16 for single-pass MXU.
    x_flat = x.reshape(N, F).astype(jnp.bfloat16)

    # M-grid: single full-array block for small N; 256-row tiles otherwise.
    if N <= TM_MAX:
        tm, Np = N, N
    else:
        tm = TM_MAX
        Np = pl.cdiv(N, tm) * tm
        if Np != N:
            x_flat = jnp.pad(x_flat, ((0, Np - N), (0, 0)))
    grid_m = Np // tm

    out = pl.pallas_call(
        classification_mlp_kernel,
        out_shape=jax.ShapeDtypeStruct((Np, Cp), jnp.float32),
        grid=(grid_m,),
        in_specs=[
            pl.BlockSpec((tm, F), lambda i: (i, 0)),    # activation tile
            pl.BlockSpec((F, Cp), lambda i: (0, 0)),    # W^T, loop-invariant
            pl.BlockSpec((1, Cp), lambda i: (0, 0)),    # bias, loop-invariant
        ],
        out_specs=pl.BlockSpec((tm, Cp), lambda i: (i, 0)),
        compiler_params=pltpu.CompilerParams(
            dimension_semantics=("parallel",)),
    )(x_flat, w, b)

    # Drop batch padding and the zero-padded class columns.
    return out[:N, :num_classes]


def reference_forward_f32(x, params_f32):
    """Pure-JAX f32 reference mirroring the PyTorch forward exactly."""
    N = x.shape[0]
    return (jnp.dot(x.reshape(N, -1), params_f32["w"],
                    precision=jax.lax.Precision.HIGHEST)
            + params_f32["b"][0])


def reference_forward_bf16(x, params_f32):
    """Matching-precision reference: bf16 operands, f32 accumulate."""
    N = x.shape[0]
    xb = x.reshape(N, -1).astype(jnp.bfloat16)
    wb = params_f32["w"].astype(jnp.bfloat16)
    return (jnp.dot(xb, wb, preferred_element_type=jnp.float32)
            + params_f32["b"][0])


def init_params(key, in_features, num_classes):
    """Build kernel params (bf16 W pre-transposed, columns padded to 128)
    plus an f32 master copy for the references.

    PyTorch nn.Linear stores weight as (C, F); we keep it pre-transposed
    (F, C) so the kernel does x @ W. Init mimics U(-1/sqrt(F), 1/sqrt(F)).
    """
    kw, kb = jax.random.split(key)
    bound = 1.0 / (in_features ** 0.5)
    w_f32 = jax.random.uniform(kw, (in_features, num_classes), jnp.float32,
                               -bound, bound)
    b_f32 = jax.random.uniform(kb, (1, num_classes), jnp.float32,
                               -bound, bound)

    # Lane-dense padding of the class dim (done once at init, not per call).
    Cp = max(LANE, pl.cdiv(num_classes, LANE) * LANE)
    pad = Cp - num_classes
    w_pad = jnp.pad(w_f32, ((0, 0), (0, pad))).astype(jnp.bfloat16)
    b_pad = jnp.pad(b_f32, ((0, 0), (0, pad)))   # bias stays f32

    kernel_params = {"w": w_pad, "b": b_pad}
    ref_params = {"w": w_f32, "b": b_f32}
    return kernel_params, ref_params


if __name__ == "__main__":
    # Small shapes consistent with the module: batch=2, patch_count=16,
    # embedding_dim=32 -> in_features = 32*17 = 544, num_classes=10.
    N = 2
    PATCH_COUNT = 16
    E = 32
    C = 10
    TOKENS = PATCH_COUNT + 1
    F = E * TOKENS

    key = jax.random.PRNGKey(0)
    kx, kp = jax.random.split(key)
    x = jax.random.normal(kx, (N, TOKENS, E), jnp.float32)
    kernel_params, ref_params = init_params(kp, F, C)

    out = classification_mlp_forward(x, kernel_params, C)
    out = jax.block_until_ready(out)
    assert out.shape == (N, C)

    # Tight check against the matching-precision (bf16-operand) reference.
    ref_bf16 = reference_forward_bf16(x, ref_params)
    err_bf16 = float(jnp.max(jnp.abs(out - ref_bf16)))
    assert jnp.allclose(out, ref_bf16, atol=2e-3, rtol=2e-3), (
        f"bf16-matched ref max err {err_bf16}")

    # Loose check against the exact f32 PyTorch-equivalent reference
    # (difference is purely the deliberate bf16 operand cast).
    ref_f32 = reference_forward_f32(x, ref_params)
    err_f32 = float(jnp.max(jnp.abs(out - ref_f32)))
    assert jnp.allclose(out, ref_f32, atol=5e-2, rtol=5e-2), (
        f"f32 ref max err {err_f32}")

    print("KERNEL_OK")
</pallas_src>

<mosaic_0001>
module attributes {stable_mosaic.version = 11 : i64} {
  func.func @classification_mlp_kernel(%arg0: i32, %arg1: memref<2x544xbf16, #tpu.memory_space<vmem>>, %arg2: memref<544x128xbf16, #tpu.memory_space<vmem>>, %arg3: memref<1x128xf32, #tpu.memory_space<vmem>>, %arg4: memref<2x128xf32, #tpu.memory_space<vmem>>) attributes {dimension_semantics = [#tpu.dimension_semantics<parallel>], iteration_bounds = array<i64: 1>, scalar_prefetch = 0 : i64, scratch_operands = 0 : i64, tpu.core_type = #tpu.core_type<tc>, window_params = [{transform_indices = @transform_0, window_bounds = array<i64: 2, 544>}, {pipeline_mode = #tpu.pipeline_mode<synchronous>, transform_indices = @transform_1, window_bounds = array<i64: 544, 128>}, {pipeline_mode = #tpu.pipeline_mode<synchronous>, transform_indices = @transform_2, window_bounds = array<i64: 1, 128>}, {transform_indices = @transform_3, window_bounds = array<i64: 2, 128>}]} {
    %c0 = arith.constant 0 : index
    %c0_0 = arith.constant 0 : index
    %0 = vector.load %arg1[%c0, %c0_0] : memref<2x544xbf16, #tpu.memory_space<vmem>>, vector<2x544xbf16>
    %c0_1 = arith.constant 0 : index
    %c0_2 = arith.constant 0 : index
    %1 = vector.load %arg2[%c0_1, %c0_2] : memref<544x128xbf16, #tpu.memory_space<vmem>>, vector<544x128xbf16>
    %cst = arith.constant dense<0.000000e+00> : vector<2x128xf32>
    %2 = tpu.matmul %0, %1, %cst {dimension_numbers = #tpu.dot_dimension_numbers<[1], [0], [0], [1], [0, 0, 1, 1], [], []>} : vector<2x544xbf16>, vector<544x128xbf16>, vector<2x128xf32> -> vector<2x128xf32>
    %c0_3 = arith.constant 0 : index
    %c0_4 = arith.constant 0 : index
    %3 = vector.load %arg3[%c0_3, %c0_4] : memref<1x128xf32, #tpu.memory_space<vmem>>, vector<1x128xf32>
    %4 = vector.broadcast %3 : vector<1x128xf32> to vector<2x128xf32>
    %5 = arith.addf %2, %4 : vector<2x128xf32>
    %c0_5 = arith.constant 0 : index
    %c0_6 = arith.constant 0 : index
    %6 = vector.load %arg4[%c0_5, %c0_6] : memref<2x128xf32, #tpu.memory_space<vmem>>, vector<2x128xf32>
    tpu.vector_store %arg4[%c0_5, %c0_6], %5 {strides = array<i32>} : memref<2x128xf32, #tpu.memory_space<vmem>>, vector<2x128xf32>,
    return
  }
  func.func @transform_0(%arg0: i32) -> (i32, i32) {
    %c0_i32 = arith.constant 0 : i32
    %c0_i32_0 = arith.constant 0 : i32
    return %arg0, %c0_i32 : i32, i32
  }
  func.func @transform_1(%arg0: i32) -> (i32, i32) {
    %c0_i32 = arith.constant 0 : i32
    %c0_i32_0 = arith.constant 0 : i32
    %c0_i32_1 = arith.constant 0 : i32
    return %c0_i32, %c0_i32_0 : i32, i32
  }
  func.func @transform_2(%arg0: i32) -> (i32, i32) {
    %c0_i32 = arith.constant 0 : i32
    %c0_i32_0 = arith.constant 0 : i32
    %c0_i32_1 = arith.constant 0 : i32
    return %c0_i32, %c0_i32_0 : i32, i32
  }
  func.func @transform_3(%arg0: i32) -> (i32, i32) {
    %c0_i32 = arith.constant 0 : i32
    %c0_i32_0 = arith.constant 0 : i32
    return %arg0, %c0_i32 : i32, i32
  }
}

</mosaic_0001>

<llo_original>
// kernel: tpu_custom_call.1
$region0: #{tpu_custom_call.1}
  #allocation0 [shape = 'u32[]', space=smem, size = 0x4, offset = 0x4, fixed_abs, tag = 'smem constant byte address 0x4 - core index']
  #allocation1 [shape = 'u32[72,128]{1,0:T(1,128)}', space=vmem, size = 0x9000, scoped, tag = 'internal scratch']
  %s0 = inlined_call_operand.hbm [shape: bf16[2,544], index: 0, kind: input, shape index: {}]
  %s1 = inlined_call_operand.hbm [shape: bf16[544,128], index: 1, kind: input, shape index: {}]
  %s2 = inlined_call_operand.vmem [shape: f32[1,128], index: 2, kind: input, shape index: {}]
  %s3 = inlined_call_operand.hbm [shape: f32[2,128], index: 3, kind: output, shape index: {}]
  %s4 = sld [smem:[#allocation0]]
  $region30: #{tpu_custom_call.1} parent=0
    _
  %s6 = ssub.s32 1, %s4
  %s7 = scalar_select 0, %s6, %s4
  $region1: #{tpu_custom_call.1} parent=0
    #allocation2 [shape = 'u8[2560]{0}', space=vmem, size = 0xc00, scoped, tag = 'input window, operand 0, single buffered']
    #allocation3 [shape = 's32[1]{0}', space=sflag, size = 0x4, scoped, tag = 'scoped memory for tpu_custom_call.1']
    #allocation4 [shape = 's32[1]{0}', space=sflag, size = 0x4, scoped, tag = 'scoped memory for tpu_custom_call.1']
    #allocation5 [shape = 'u8[139264]{0}', space=vmem, size = 0x22000, scoped, tag = 'input window, operand 1, single buffered']
    #allocation6 [shape = 's32[1]{0}', space=sflag, size = 0x4, scoped, tag = 'scoped memory for tpu_custom_call.1']
    #allocation7 [shape = 'u8[1024]{0}', space=vmem, size = 0x400, scoped, tag = 'output window, operand 0, single buffered']
    %8 = vsyncpa [#allocation3], 0
    %9 = vsyncpa [#allocation6], 0
    %10 = vsyncpa [#allocation4], 0
    // Predicated region
    $region2: #{tpu_custom_call.1} parent=1 // pred_check
      _
    $region3: #{tpu_custom_call.1} parent=1 // pred_check_branch
      %12 = sbr.rel (0) target = $region5
    $region4: #{tpu_custom_call.1} parent=1 // pred_region
      %14 = vsyncadd [#allocation3], 0
      %s16 = sshll.u32 %s0, 4
      %s17 = int_to_ptr.hbm [resolvable:$true] %s16
      %s18 = sshll.u32 [#allocation2], 4
      %s19 = int_to_ptr.vmem [resolvable:$true] %s18
      %21 = dma.hbm_to_vmem [thread:$0]  %s17, 80, %s19, [#allocation3]
    $region5: #{tpu_custom_call.1} parent=1 // pred_fallthru
      _
    // Predicated region
    $region6: #{tpu_custom_call.1} parent=1 // pred_check
      _
    $region7: #{tpu_custom_call.1} parent=1 // pred_check_branch
      %23 = sbr.rel (0) target = $region9
    $region8: #{tpu_custom_call.1} parent=1 // pred_region
      %25 = vsyncadd [#allocation6], 0
      %s26 = sshll.u32 %s1, 4
      %s27 = int_to_ptr.hbm [resolvable:$true] %s26
      %s28 = sshll.u32 [#allocation5], 4
      %s29 = int_to_ptr.vmem [resolvable:$true] %s28
      %34 = dma.hbm_to_vmem [thread:$0]  %s27, 4352, %s29, [#allocation6], 64, 64, 4
    $region9: #{tpu_custom_call.1} parent=1 // pred_fallthru
      _
    // Predicated region
    $region10: #{tpu_custom_call.1} parent=1 // pred_check
      _
    $region11: #{tpu_custom_call.1} parent=1 // pred_check_branch
      %36 = sbr.rel (0) target = $region13
    $region12: #{tpu_custom_call.1} parent=1 // pred_region
      _
    $region13: #{tpu_custom_call.1} parent=1 // pred_fallthru
      _
    // Predicated region
    $region14: #{tpu_custom_call.1} parent=1 // pred_check
      _
    $region15: #{tpu_custom_call.1} parent=1 // pred_check_branch
      %38 = sbr.rel (0) target = $region17
    $region16: #{tpu_custom_call.1} parent=1 // pred_region
      %40 = dma.done [#allocation3], 80
    $region17: #{tpu_custom_call.1} parent=1 // pred_fallthru
      _
    // Predicated region
    $region18: #{tpu_custom_call.1} parent=1 // pred_check
      _
    $region19: #{tpu_custom_call.1} parent=1 // pred_check_branch
      %42 = sbr.rel (0) target = $region21
    $region20: #{tpu_custom_call.1} parent=1 // pred_region
      %44 = dma.done [#allocation6], 4352
    $region21: #{tpu_custom_call.1} parent=1 // pred_fallthru
      _
    %v46 = vld [vmem:[#allocation2] sm:$0x1f]
    %v47 = vld [vmem:[#allocation5] sm:$0xf]
    %v48 = vld [vmem:[#allocation5 + $0x4] sm:$0xf]
    %v49 = vld [vmem:[#allocation5 + $0x8] sm:$0xf]
    %v50 = vld [vmem:[#allocation5 + $0xc] sm:$0xf]
    %v51 = vld [vmem:[#allocation5 + $0x10] sm:$0xf]
    %v52 = vld [vmem:[#allocation5 + $0x14] sm:$0xf]
    %v53 = vld [vmem:[#allocation5 + $0x18] sm:$0xf]
    %v54 = vld [vmem:[#allocation5 + $0x1c] sm:$0xf]
    %v55 = vld [vmem:[#allocation5 + $0x20] sm:$0xf]
    %v56 = vld [vmem:[#allocation5 + $0x24] sm:$0xf]
    %v57 = vld [vmem:[#allocation5 + $0x28] sm:$0xf]
    %v58 = vld [vmem:[#allocation5 + $0x2c] sm:$0xf]
    %v59 = vld [vmem:[#allocation5 + $0x30] sm:$0xf]
    %v60 = vld [vmem:[#allocation5 + $0x34] sm:$0xf]
    %v61 = vld [vmem:[#allocation5 + $0x38] sm:$0xf]
    %v62 = vld [vmem:[#allocation5 + $0x3c] sm:$0xf]
    %v63 = vld [vmem:[#allocation5 + $0x40] sm:$0xf]
    %v64 = vld [vmem:[#allocation5 + $0x44] sm:$0xf]
    %v65 = vld [vmem:[#allocation5 + $0x48] sm:$0xf]
    %v66 = vld [vmem:[#allocation5 + $0x4c] sm:$0xf]
    %v67 = vld [vmem:[#allocation5 + $0x50] sm:$0xf]
    %v68 = vld [vmem:[#allocation5 + $0x54] sm:$0xf]
    %v69 = vld [vmem:[#allocation5 + $0x58] sm:$0xf]
    %v70 = vld [vmem:[#allocation5 + $0x5c] sm:$0xf]
    %v71 = vld [vmem:[#allocation5 + $0x60] sm:$0xf]
    %v72 = vld [vmem:[#allocation5 + $0x64] sm:$0xf]
    %v73 = vld [vmem:[#allocation5 + $0x68] sm:$0xf]
    %v74 = vld [vmem:[#allocation5 + $0x6c] sm:$0xf]
    %v75 = vld [vmem:[#allocation5 + $0x70] sm:$0xf]
    %v76 = vld [vmem:[#allocation5 + $0x74] sm:$0xf]
    %v77 = vld [vmem:[#allocation5 + $0x78] sm:$0xf]
    %v78 = vld [vmem:[#allocation5 + $0x7c] sm:$0xf]
    %v79 = vld [vmem:[#allocation5 + $0x80] sm:$0xf]
    %v80 = vld [vmem:[#allocation5 + $0x84] sm:$0xf]
    %v81 = vld [vmem:[#allocation5 + $0x88] sm:$0xf]
    %v82 = vld [vmem:[#allocation5 + $0x8c] sm:$0xf]
    %v83 = vld [vmem:[#allocation5 + $0x90] sm:$0xf]
    %v84 = vld [vmem:[#allocation5 + $0x94] sm:$0xf]
    %v85 = vld [vmem:[#allocation5 + $0x98] sm:$0xf]
    %v86 = vld [vmem:[#allocation5 + $0x9c] sm:$0xf]
    %v87 = vld [vmem:[#allocation5 + $0xa0] sm:$0xf]
    %v88 = vld [vmem:[#allocation5 + $0xa4] sm:$0xf]
    %v89 = vld [vmem:[#allocation5 + $0xa8] sm:$0xf]
    %v90 = vld [vmem:[#allocation5 + $0xac] sm:$0xf]
    %v91 = vld [vmem:[#allocation5 + $0xb0] sm:$0xf]
    %v92 = vld [vmem:[#allocation5 + $0xb4] sm:$0xf]
    %v93 = vld [vmem:[#allocation5 + $0xb8] sm:$0xf]
    %v94 = vld [vmem:[#allocation5 + $0xbc] sm:$0xf]
    %v95 = vld [vmem:[#allocation5 + $0xc0] sm:$0xf]
    %v96 = vld [vmem:[#allocation5 + $0xc4] sm:$0xf]
    %v97 = vld [vmem:[#allocation5 + $0xc8] sm:$0xf]
    %v98 = vld [vmem:[#allocation5 + $0xcc] sm:$0xf]
    %v99 = vld [vmem:[#allocation5 + $0xd0] sm:$0xf]
    %v100 = vld [vmem:[#allocation5 + $0xd4] sm:$0xf]
    %v101 = vld [vmem:[#allocation5 + $0xd8] sm:$0xf]
    %v102 = vld [vmem:[#allocation5 + $0xdc] sm:$0xf]
    %v103 = vld [vmem:[#allocation5 + $0xe0] sm:$0xf]
    %v104 = vld [vmem:[#allocation5 + $0xe4] sm:$0xf]
    %v105 = vld [vmem:[#allocation5 + $0xe8] sm:$0xf]
    %v106 = vld [vmem:[#allocation5 + $0xec] sm:$0xf]
    %v107 = vld [vmem:[#allocation5 + $0xf0] sm:$0xf]
    %v108 = vld [vmem:[#allocation5 + $0xf4] sm:$0xf]
    %v109 = vld [vmem:[#allocation5 + $0xf8] sm:$0xf]
    %v110 = vld [vmem:[#allocation5 + $0xfc] sm:$0xf]
    %v111 = vld [vmem:[#allocation5 + $0x100] sm:$0xf]
    %v112 = vld [vmem:[#allocation5 + $0x104] sm:$0xf]
    %v113 = vld [vmem:[#allocation5 + $0x108] sm:$0xf]
    %v114 = vld [vmem:[#allocation5 + $0x10c] sm:$0xf]
    %v115 = vld [vmem:[%s2] sm:$0x1]
    %v117 = vperm.slane %v115, 0
    %120 = vst [vmem:[#allocation1] ss:$9 sm:$0xff] %v46
    %v121 = vld [vmem:[#allocation1] sm:$0xff]
    %v122 = vld [vmem:[#allocation1 + $0x9] sm:$0xff]
    %v123 = vld [vmem:[#allocation1 + $0x12] sm:$0xff]
    %v124 = vld [vmem:[#allocation1 + $0x1b] sm:$0xff]
    %v125 = vld [vmem:[#allocation1 + $0x24] sm:$0xff]
    %v198 = vunpack.c.l.b16 %v47
    %v199 = vunpack.c.l.b16 %v48
    %v200 = vunpack.c.l.b16 %v49
    %v201 = vunpack.c.l.b16 %v50
    %v202 = vunpack.c.l.b16 %v51
    %v203 = vunpack.c.l.b16 %v52
    %v204 = vunpack.c.l.b16 %v53
    %v205 = vunpack.c.l.b16 %v54
    %v206 = vunpack.c.l.b16 %v55
    %v207 = vunpack.c.l.b16 %v56
    %v208 = vunpack.c.l.b16 %v57
    %v209 = vunpack.c.l.b16 %v58
    %v210 = vunpack.c.l.b16 %v59
    %v211 = vunpack.c.l.b16 %v60
    %v212 = vunpack.c.l.b16 %v61
    %v213 = vunpack.c.l.b16 %v62
    %v214 = vunpack.c.l.b16 %v63
    %v215 = vunpack.c.l.b16 %v64
    %v216 = vunpack.c.l.b16 %v65
    %v217 = vunpack.c.l.b16 %v66
    %v218 = vunpack.c.l.b16 %v67
    %v219 = vunpack.c.l.b16 %v68
    %v220 = vunpack.c.l.b16 %v69
    %v221 = vunpack.c.l.b16 %v70
    %v222 = vunpack.c.l.b16 %v71
    %v223 = vunpack.c.l.b16 %v72
    %v224 = vunpack.c.l.b16 %v73
    %v225 = vunpack.c.l.b16 %v74
    %v226 = vunpack.c.l.b16 %v75
    %v227 = vunpack.c.l.b16 %v76
    %v228 = vunpack.c.l.b16 %v77
    %v229 = vunpack.c.l.b16 %v78
    %v230 = vunpack.c.l.b16 %v79
    %v231 = vunpack.c.l.b16 %v80
    %v232 = vunpack.c.l.b16 %v81
    %v233 = vunpack.c.l.b16 %v82
    %v234 = vunpack.c.l.b16 %v83
    %v235 = vunpack.c.l.b16 %v84
    %v236 = vunpack.c.l.b16 %v85
    %v237 = vunpack.c.l.b16 %v86
    %v238 = vunpack.c.l.b16 %v87
    %v239 = vunpack.c.l.b16 %v88
    %v240 = vunpack.c.l.b16 %v89
    %v241 = vunpack.c.l.b16 %v90
    %v242 = vunpack.c.l.b16 %v91
    %v243 = vunpack.c.l.b16 %v92
    %v244 = vunpack.c.l.b16 %v93
    %v245 = vunpack.c.l.b16 %v94
    %v246 = vunpack.c.l.b16 %v95
    %v247 = vunpack.c.l.b16 %v96
    %v248 = vunpack.c.l.b16 %v97
    %v249 = vunpack.c.l.b16 %v98
    %v250 = vunpack.c.l.b16 %v99
    %v251 = vunpack.c.l.b16 %v100
    %v252 = vunpack.c.l.b16 %v101
    %v253 = vunpack.c.l.b16 %v102
    %v254 = vunpack.c.l.b16 %v103
    %v255 = vunpack.c.l.b16 %v104
    %v256 = vunpack.c.l.b16 %v105
    %v257 = vunpack.c.l.b16 %v106
    %v258 = vunpack.c.l.b16 %v107
    %v259 = vunpack.c.l.b16 %v108
    %v260 = vunpack.c.l.b16 %v109
    %v261 = vunpack.c.l.b16 %v110
    %v262 = vunpack.c.l.b16 %v111
    %v263 = vunpack.c.l.b16 %v112
    %v264 = vunpack.c.l.b16 %v113
    %v265 = vunpack.c.l.b16 %v114
    %v266 = vpack.c.b16 %v199, %v198
    %v267 = vpack.c.b16 %v201, %v200
    %v268 = vpack.c.b16 %v203, %v202
    %v269 = vpack.c.b16 %v205, %v204
    %v270 = vpack.c.b16 %v207, %v206
    %v271 = vpack.c.b16 %v209, %v208
    %v272 = vpack.c.b16 %v211, %v210
    %v273 = vpack.c.b16 %v213, %v212
    %v274 = vpack.c.b16 %v215, %v214
    %v275 = vpack.c.b16 %v217, %v216
    %v276 = vpack.c.b16 %v219, %v218
    %v277 = vpack.c.b16 %v221, %v220
    %v278 = vpack.c.b16 %v223, %v222
    %v279 = vpack.c.b16 %v225, %v224
    %v280 = vpack.c.b16 %v227, %v226
    %v281 = vpack.c.b16 %v229, %v228
    %v282 = vpack.c.b16 %v231, %v230
    %v283 = vpack.c.b16 %v233, %v232
    %v284 = vpack.c.b16 %v235, %v234
    %v285 = vpack.c.b16 %v237, %v236
    %v286 = vpack.c.b16 %v239, %v238
    %v287 = vpack.c.b16 %v241, %v240
    %v288 = vpack.c.b16 %v243, %v242
    %v289 = vpack.c.b16 %v245, %v244
    %v290 = vpack.c.b16 %v247, %v246
    %v291 = vpack.c.b16 %v249, %v248
    %v292 = vpack.c.b16 %v251, %v250
    %v293 = vpack.c.b16 %v253, %v252
    %v294 = vpack.c.b16 %v255, %v254
    %v295 = vpack.c.b16 %v257, %v256
    %v296 = vpack.c.b16 %v259, %v258
    %v297 = vpack.c.b16 %v261, %v260
    %v298 = vpack.c.b16 %v263, %v262
    %v299 = vpack.c.b16 %v265, %v264
    %vm334 = vcmask 261120
    %v335 = vsel %vm334, %v125, 0
    %337 = vmatpush.bf16.msra.mxu0 %v273
    %338 = vmatpush.bf16.msra.mxu0 %v272
    %339 = vmatpush.bf16.msra.mxu0 %v271
    %340 = vmatpush.bf16.msra.mxu0 %v270
    %341 = vmatpush.bf16.msra.mxu0 %v269
    %342 = vmatpush.bf16.msra.mxu0 %v268
    %343 = vmatpush.bf16.msra.mxu0 %v267
    %344 = vmatpush.bf16.msra.mxu0 %v266
    %345 = vmatmul.bf16.gmra.mxu0 %v121
    %v346 = vpop.f32.mrf.mxu0
    %v347 = vadd.f32 %v117, %v346
    %v348 = vpop.f32.mrf.mxu0
    %349 = vdwg.mxu0
    %350 = vmatpush.bf16.msra.mxu0 %v281
    %351 = vmatpush.bf16.msra.mxu0 %v280
    %352 = vmatpush.bf16.msra.mxu0 %v279
    %353 = vmatpush.bf16.msra.mxu0 %v278
    %354 = vmatpush.bf16.msra.mxu0 %v277
    %355 = vmatpush.bf16.msra.mxu0 %v276
    %356 = vmatpush.bf16.msra.mxu0 %v275
    %357 = vmatpush.bf16.msra.mxu0 %v274
    %358 = vmatmul.bf16.gmra.mxu0 %v122
    %v359 = vpop.f32.mrf.mxu0
    %v360 = vadd.f32 %v347, %v359
    %v361 = vpop.f32.mrf.mxu0
    %362 = vdwg.mxu0
    %363 = vmatpush.bf16.msra.mxu0 %v289
    %364 = vmatpush.bf16.msra.mxu0 %v288
    %365 = vmatpush.bf16.msra.mxu0 %v287
    %366 = vmatpush.bf16.msra.mxu0 %v286
    %367 = vmatpush.bf16.msra.mxu0 %v285
    %368 = vmatpush.bf16.msra.mxu0 %v284
    %369 = vmatpush.bf16.msra.mxu0 %v283
    %370 = vmatpush.bf16.msra.mxu0 %v282
    %371 = vmatmul.bf16.gmra.mxu0 %v123
    %v372 = vpop.f32.mrf.mxu0
    %v373 = vadd.f32 %v360, %v372
    %v374 = vpop.f32.mrf.mxu0
    %375 = vdwg.mxu0
    %376 = vmatpush.bf16.msra.mxu0 %v297
    %377 = vmatpush.bf16.msra.mxu0 %v296
    %378 = vmatpush.bf16.msra.mxu0 %v295
    %379 = vmatpush.bf16.msra.mxu0 %v294
    %380 = vmatpush.bf16.msra.mxu0 %v293
    %381 = vmatpush.bf16.msra.mxu0 %v292
    %382 = vmatpush.bf16.msra.mxu0 %v291
    %383 = vmatpush.bf16.msra.mxu0 %v290
    %384 = vmatmul.bf16.gmra.mxu0 %v124
    %v385 = vpop.f32.mrf.mxu0
    %v386 = vadd.f32 %v373, %v385
    %v387 = vpop.f32.mrf.mxu0
    %388 = vdwg.mxu0
    %389 = vmatpush.bf16.msra.mxu0 0
    %390 = vmatpush.bf16.msra.mxu0 0
    %391 = vmatpush.bf16.msra.mxu0 0
    %392 = vmatpush.bf16.msra.mxu0 0
    %393 = vmatpush.bf16.msra.mxu0 0
    %394 = vmatpush.bf16.msra.mxu0 0
    %395 = vmatpush.bf16.msra.mxu0 %v299
    %396 = vmatpush.bf16.msra.mxu0 %v298
    %397 = vmatmul.bf16.gmra.mxu0 %v335
    %v398 = vpop.f32.mrf.mxu0
    %v399 = vadd.f32 %v386, %v398
    %v400 = vpop.f32.mrf.mxu0
    %401 = vdwg.mxu0
    %402 = vst [vmem:[#allocation7] sm:$0x3] %v399
    // Predicated region
    $region22: #{tpu_custom_call.1} parent=1 // pred_check
      _
    $region23: #{tpu_custom_call.1} parent=1 // pred_check_branch
      %404 = sbr.rel (0) target = $region25
    $region24: #{tpu_custom_call.1} parent=1 // pred_region
      %406 = vsyncadd [#allocation4], 0
      %s408 = sshll.u32 [#allocation7], 4
      %s409 = int_to_ptr.vmem [resolvable:$true] %s408
      %s410 = sshll.u32 %s3, 4
      %s411 = int_to_ptr.hbm [resolvable:$true] %s410
      %413 = dma.vmem_to_hbm [thread:$0]  %s409, 32, %s411, [#allocation4]
    $region25: #{tpu_custom_call.1} parent=1 // pred_fallthru
      _
    // Predicated region
    $region26: #{tpu_custom_call.1} parent=1 // pred_check
      _
    $region27: #{tpu_custom_call.1} parent=1 // pred_check_branch
      %415 = sbr.rel (0) target = $region29
    $region28: #{tpu_custom_call.1} parent=1 // pred_region
      %417 = dma.done [#allocation4], 32
    $region29: #{tpu_custom_call.1} parent=1 // pred_fallthru
      _
    %418 = vsyncpa [#allocation3], 1
    %419 = vsyncpa [#allocation6], 1
    %420 = vsyncpa [#allocation4], 1

</llo_original>
